<compile_context>
chip_gen: v5e
topology: v5e:2x2
jax: 0.10.0
libtpu: 0.0.40
codegen_flags: <defaults>
</compile_context>

<pallas_src>
import functools

import jax
import jax.numpy as jnp
from jax.experimental import pallas as pl
from jax.experimental.pallas import tpu as pltpu

HIDDEN = 120   # logical hidden width (PyTorch module)
HP = 128       # lane-dense padded width used inside the kernel
MP = 8         # sublane-dense padded row count (single state lives in row 0)


def dqn_kernel(x_ref, w_ref, b_ref, out_ref):
    # x_ref: (MP, HP) bf16 | w_ref: (4, HP, HP) bf16 | b_ref: (4, HP) f32
    # out_ref: (MP, HP) f32
    # RNN layer 0: h = tanh(x @ W0 + (b_ih0 + b_hh0))       (h0 == 0)
    h = jnp.dot(x_ref[...], w_ref[0],
                preferred_element_type=jnp.float32) + b_ref[0:1, :]
    h = jnp.tanh(h)
    # RNN layer 1
    h = jnp.dot(h.astype(jnp.bfloat16), w_ref[1],
                preferred_element_type=jnp.float32) + b_ref[1:2, :]
    h = jnp.tanh(h)
    # RNN layer 2
    h = jnp.dot(h.astype(jnp.bfloat16), w_ref[2],
                preferred_element_type=jnp.float32) + b_ref[2:3, :]
    h = jnp.tanh(h)
    # Final Linear(120, outputs) (padded to 128 output lanes)
    out_ref[...] = jnp.dot(h.astype(jnp.bfloat16), w_ref[3],
                           preferred_element_type=jnp.float32) + b_ref[3:4, :]


def make_params(input_layer, outputs, key):
    """Logical (unpadded, f32) parameters with PyTorch-style uniform init."""
    h = HIDDEN
    ks = jax.random.split(key, 11)
    s = 1.0 / jnp.sqrt(jnp.float32(h))

    def u(k, shape, scale):
        return jax.random.uniform(k, shape, jnp.float32, -scale, scale)

    w0 = u(ks[0], (input_layer, h), s)            # W_ih_l0^T
    w1 = u(ks[1], (h, h), s)                      # W_ih_l1^T
    w2 = u(ks[2], (h, h), s)                      # W_ih_l2^T
    b0 = u(ks[3], (h,), s) + u(ks[4], (h,), s)    # b_ih_l0 + b_hh_l0
    b1 = u(ks[5], (h,), s) + u(ks[6], (h,), s)
    b2 = u(ks[7], (h,), s) + u(ks[8], (h,), s)
    wf = u(ks[9], (h, outputs), s)                # Linear weight^T
    bf = u(ks[10], (outputs,), s)                 # Linear bias
    return dict(w0=w0, w1=w1, w2=w2, b0=b0, b1=b1, b2=b2, wf=wf, bf=bf)


def pack_params(p):
    """Zero-pad to (HP, HP)/(HP,) and coalesce into 2 kernel operands."""
    def pad2(w):
        return jnp.zeros((HP, HP), jnp.float32).at[:w.shape[0], :w.shape[1]].set(w)

    def pad1(b):
        return jnp.zeros((HP,), jnp.float32).at[:b.shape[0]].set(b)

    W = jnp.stack([pad2(p["w0"]), pad2(p["w1"]),
                   pad2(p["w2"]), pad2(p["wf"])]).astype(jnp.bfloat16)  # (4,HP,HP)
    B = jnp.stack([pad1(p["b0"]), pad1(p["b1"]),
                   pad1(p["b2"]), pad1(p["bf"])])                        # (4,HP) f32
    return W, B


@functools.partial(jax.jit, static_argnames=("outputs",))
def dqn_forward(x, W, B, outputs):
    """x: (input_layer,) -> (1, 1, outputs), matching the PyTorch forward."""
    il = x.shape[-1]
    x_pad = jnp.zeros((MP, HP), jnp.float32).at[0, :il].set(
        x.astype(jnp.float32)).astype(jnp.bfloat16)

    cost = pl.CostEstimate(
        flops=2 * 4 * MP * HP * HP,                      # four (8,128)x(128,128) dots
        transcendentals=3 * MP * HP,                     # three tanh layers
        bytes_accessed=int(W.size) * 2 + int(B.size) * 4 + MP * HP * 2 + MP * HP * 4)

    vmem = pl.BlockSpec(memory_space=pltpu.MemorySpace.VMEM)
    out = pl.pallas_call(
        dqn_kernel,
        out_shape=jax.ShapeDtypeStruct((MP, HP), jnp.float32),
        in_specs=[vmem, vmem, vmem],
        out_specs=vmem,
        cost_estimate=cost,
    )(x_pad, W, B)
    # PyTorch `out` from the RNN path has shape (seq_len=1, batch=1, features)
    return out[0, :outputs].reshape(1, 1, outputs)


def dqn_forward_ref_packed(x, W, B, outputs):
    """Pure-JAX reference over the same padded / bf16 path as the kernel."""
    il = x.shape[-1]
    xp = jnp.zeros((MP, HP), jnp.float32).at[0, :il].set(x).astype(jnp.bfloat16)
    h = jnp.tanh(jnp.dot(xp, W[0], preferred_element_type=jnp.float32) + B[0])
    h = jnp.tanh(jnp.dot(h.astype(jnp.bfloat16), W[1],
                         preferred_element_type=jnp.float32) + B[1])
    h = jnp.tanh(jnp.dot(h.astype(jnp.bfloat16), W[2],
                         preferred_element_type=jnp.float32) + B[2])
    y = jnp.dot(h.astype(jnp.bfloat16), W[3],
                preferred_element_type=jnp.float32) + B[3]
    return y[0, :outputs].reshape(1, 1, outputs)


def dqn_forward_ref_f32(x, p):
    """Unpadded full-f32 logical reference (validates padding/packing)."""
    h = jnp.tanh(x.reshape(1, -1) @ p["w0"] + p["b0"])
    h = jnp.tanh(h @ p["w1"] + p["b1"])
    h = jnp.tanh(h @ p["w2"] + p["b2"])
    y = h @ p["wf"] + p["bf"]
    return y.reshape(1, 1, -1)


if __name__ == "__main__":
    input_layer = 32
    outputs = 8

    key = jax.random.PRNGKey(0)
    k_x, k_p = jax.random.split(key)
    x = jax.random.normal(k_x, (input_layer,), jnp.float32)

    params = make_params(input_layer, outputs, k_p)
    W, B = pack_params(params)

    y = dqn_forward(x, W, B, outputs)
    y = jax.block_until_ready(y)

    y_ref_packed = dqn_forward_ref_packed(x, W, B, outputs)   # same bf16 path
    y_ref_f32 = dqn_forward_ref_f32(x, params)                # logical f32 path

    assert y.shape == (1, 1, outputs), y.shape
    assert jnp.allclose(y, y_ref_packed, atol=1e-4, rtol=1e-4), (y, y_ref_packed)
    assert jnp.allclose(y, y_ref_f32, atol=5e-2, rtol=5e-2), (y, y_ref_f32)

    print("KERNEL_OK")
</pallas_src>

<mosaic_0001>
module attributes {stable_mosaic.version = 11 : i64} {
  func.func @dqn_kernel(%arg0: memref<8x128xbf16, #tpu.memory_space<vmem>>, %arg1: memref<4x128x128xbf16, #tpu.memory_space<vmem>>, %arg2: memref<4x128xf32, #tpu.memory_space<vmem>>, %arg3: memref<8x128xf32, #tpu.memory_space<vmem>>) attributes {dimension_semantics = [], scalar_prefetch = 0 : i64, scratch_operands = 0 : i64, tpu.core_type = #tpu.core_type<tc>} {
    %c0 = arith.constant 0 : index
    %c0_0 = arith.constant 0 : index
    %0 = vector.load %arg0[%c0, %c0_0] : memref<8x128xbf16, #tpu.memory_space<vmem>>, vector<8x128xbf16>
    %c0_1 = arith.constant 0 : index
    %c0_2 = arith.constant 0 : index
    %c0_3 = arith.constant 0 : index
    %1 = vector.load %arg1[%c0_1, %c0_2, %c0_3] : memref<4x128x128xbf16, #tpu.memory_space<vmem>>, vector<1x128x128xbf16>
    %2 = vector.shape_cast %1 : vector<1x128x128xbf16> to vector<128x128xbf16>
    %cst = arith.constant dense<0.000000e+00> : vector<8x128xf32>
    %3 = tpu.matmul %0, %2, %cst {dimension_numbers = #tpu.dot_dimension_numbers<[1], [0], [0], [1], [0, 0, 1, 1], [], []>} : vector<8x128xbf16>, vector<128x128xbf16>, vector<8x128xf32> -> vector<8x128xf32>
    %c0_4 = arith.constant 0 : index
    %c0_5 = arith.constant 0 : index
    %4 = vector.load %arg2[%c0_4, %c0_5] : memref<4x128xf32, #tpu.memory_space<vmem>>, vector<1x128xf32>
    %5 = vector.broadcast %4 : vector<1x128xf32> to vector<8x128xf32>
    %6 = arith.addf %3, %5 : vector<8x128xf32>
    %7 = math.tanh %6 : vector<8x128xf32>
    %8 = arith.truncf %7 : vector<8x128xf32> to vector<8x128xbf16>
    %c1 = arith.constant 1 : index
    %c0_6 = arith.constant 0 : index
    %c0_7 = arith.constant 0 : index
    %9 = vector.load %arg1[%c1, %c0_6, %c0_7] : memref<4x128x128xbf16, #tpu.memory_space<vmem>>, vector<1x128x128xbf16>
    %10 = vector.shape_cast %9 : vector<1x128x128xbf16> to vector<128x128xbf16>
    %cst_8 = arith.constant dense<0.000000e+00> : vector<8x128xf32>
    %11 = tpu.matmul %8, %10, %cst_8 {dimension_numbers = #tpu.dot_dimension_numbers<[1], [0], [0], [1], [0, 0, 1, 1], [], []>} : vector<8x128xbf16>, vector<128x128xbf16>, vector<8x128xf32> -> vector<8x128xf32>
    %c1_9 = arith.constant 1 : index
    %c0_10 = arith.constant 0 : index
    %12 = vector.load %arg2[%c1_9, %c0_10] : memref<4x128xf32, #tpu.memory_space<vmem>>, vector<1x128xf32>
    %13 = vector.broadcast %12 : vector<1x128xf32> to vector<8x128xf32>
    %14 = arith.addf %11, %13 : vector<8x128xf32>
    %15 = math.tanh %14 : vector<8x128xf32>
    %16 = arith.truncf %15 : vector<8x128xf32> to vector<8x128xbf16>
    %c2 = arith.constant 2 : index
    %c0_11 = arith.constant 0 : index
    %c0_12 = arith.constant 0 : index
    %17 = vector.load %arg1[%c2, %c0_11, %c0_12] : memref<4x128x128xbf16, #tpu.memory_space<vmem>>, vector<1x128x128xbf16>
    %18 = vector.shape_cast %17 : vector<1x128x128xbf16> to vector<128x128xbf16>
    %cst_13 = arith.constant dense<0.000000e+00> : vector<8x128xf32>
    %19 = tpu.matmul %16, %18, %cst_13 {dimension_numbers = #tpu.dot_dimension_numbers<[1], [0], [0], [1], [0, 0, 1, 1], [], []>} : vector<8x128xbf16>, vector<128x128xbf16>, vector<8x128xf32> -> vector<8x128xf32>
    %c2_14 = arith.constant 2 : index
    %c0_15 = arith.constant 0 : index
    %20 = vector.load %arg2[%c2_14, %c0_15] : memref<4x128xf32, #tpu.memory_space<vmem>>, vector<1x128xf32>
    %21 = vector.broadcast %20 : vector<1x128xf32> to vector<8x128xf32>
    %22 = arith.addf %19, %21 : vector<8x128xf32>
    %23 = math.tanh %22 : vector<8x128xf32>
    %24 = arith.truncf %23 : vector<8x128xf32> to vector<8x128xbf16>
    %c3 = arith.constant 3 : index
    %c0_16 = arith.constant 0 : index
    %c0_17 = arith.constant 0 : index
    %25 = vector.load %arg1[%c3, %c0_16, %c0_17] : memref<4x128x128xbf16, #tpu.memory_space<vmem>>, vector<1x128x128xbf16>
    %26 = vector.shape_cast %25 : vector<1x128x128xbf16> to vector<128x128xbf16>
    %cst_18 = arith.constant dense<0.000000e+00> : vector<8x128xf32>
    %27 = tpu.matmul %24, %26, %cst_18 {dimension_numbers = #tpu.dot_dimension_numbers<[1], [0], [0], [1], [0, 0, 1, 1], [], []>} : vector<8x128xbf16>, vector<128x128xbf16>, vector<8x128xf32> -> vector<8x128xf32>
    %c3_19 = arith.constant 3 : index
    %c0_20 = arith.constant 0 : index
    %28 = vector.load %arg2[%c3_19, %c0_20] : memref<4x128xf32, #tpu.memory_space<vmem>>, vector<1x128xf32>
    %29 = vector.broadcast %28 : vector<1x128xf32> to vector<8x128xf32>
    %30 = arith.addf %27, %29 : vector<8x128xf32>
    %c0_21 = arith.constant 0 : index
    %c0_22 = arith.constant 0 : index
    %31 = vector.load %arg3[%c0_21, %c0_22] : memref<8x128xf32, #tpu.memory_space<vmem>>, vector<8x128xf32>
    tpu.vector_store %arg3[%c0_21, %c0_22], %30 {strides = array<i32>} : memref<8x128xf32, #tpu.memory_space<vmem>>, vector<8x128xf32>,
    return
  }
}

</mosaic_0001>

<llo_original>
// kernel: dqn_forward.1
$region0: #{dqn_forward.1}
  #allocation0 [shape = 'u32[]', space=smem, size = 0x4, offset = 0x4, fixed_abs, tag = 'smem constant byte address 0x4 - core index']
  #allocation1 [shape = 'u32[72,128]{1,0:T(1,128)}', space=vmem, size = 0x9000, scoped, tag = 'internal scratch']
  %s0 = inlined_call_operand.vmem [shape: bf16[8,128], index: 0, kind: input, shape index: {}]
  %s1 = inlined_call_operand.hbm [shape: bf16[4,128,128], index: 1, kind: input, shape index: {}]
  %s2 = inlined_call_operand.vmem [shape: f32[4,128], index: 2, kind: input, shape index: {}]
  %s3 = inlined_call_operand.vmem [shape: f32[8,128], index: 3, kind: output, shape index: {}]
  %s4 = sld [smem:[#allocation0]]
  $region26: #{dqn_forward.1} parent=0
    _
  %s6 = ssub.s32 1, %s4
  %s7 = scalar_select 0, %s6, %s4
  $region1: #{dqn_forward.1} parent=0
    #allocation2 [shape = 'u8[131072]{0}', space=vmem, size = 0x20000, scoped, tag = 'input window, operand 1, single buffered']
    #allocation3 [shape = 's32[1]{0}', space=sflag, size = 0x4, scoped, tag = 'scoped memory for dqn_forward.1']
    %8 = vsyncpa [#allocation3], 0
    // Predicated region
    $region2: #{dqn_forward.1} parent=1 // pred_check
      _
    $region3: #{dqn_forward.1} parent=1 // pred_check_branch
      %10 = sbr.rel (0) target = $region5
    $region4: #{dqn_forward.1} parent=1 // pred_region
      _
    $region5: #{dqn_forward.1} parent=1 // pred_fallthru
      _
    // Predicated region
    $region6: #{dqn_forward.1} parent=1 // pred_check
      _
    $region7: #{dqn_forward.1} parent=1 // pred_check_branch
      %12 = sbr.rel (0) target = $region9
    $region8: #{dqn_forward.1} parent=1 // pred_region
      %14 = vsyncadd [#allocation3], 0
      %s15 = sshll.u32 %s1, 4
      %s16 = int_to_ptr.hbm [resolvable:$true] %s15
      %s17 = sshll.u32 [#allocation2], 4
      %s18 = int_to_ptr.vmem [resolvable:$true] %s17
      %23 = dma.hbm_to_vmem [thread:$0]  %s16, 4096, %s18, [#allocation3], 64, 64, 4
    $region9: #{dqn_forward.1} parent=1 // pred_fallthru
      _
    // Predicated region
    $region10: #{dqn_forward.1} parent=1 // pred_check
      _
    $region11: #{dqn_forward.1} parent=1 // pred_check_branch
      %25 = sbr.rel (0) target = $region13
    $region12: #{dqn_forward.1} parent=1 // pred_region
      _
    $region13: #{dqn_forward.1} parent=1 // pred_fallthru
      _
    // Predicated region
    $region14: #{dqn_forward.1} parent=1 // pred_check
      _
    $region15: #{dqn_forward.1} parent=1 // pred_check_branch
      %27 = sbr.rel (0) target = $region17
    $region16: #{dqn_forward.1} parent=1 // pred_region
      %29 = dma.done [#allocation3], 4096
    $region17: #{dqn_forward.1} parent=1 // pred_fallthru
      _
    %v30 = vld [vmem:[%s0] sm:$0xf]
    %v31 = vld [vmem:[#allocation2] sm:$0xf]
    %v32 = vld [vmem:[#allocation2 + $0x4] sm:$0xf]
    %v33 = vld [vmem:[#allocation2 + $0x8] sm:$0xf]
    %v34 = vld [vmem:[#allocation2 + $0xc] sm:$0xf]
    %v35 = vld [vmem:[#allocation2 + $0x10] sm:$0xf]
    %v36 = vld [vmem:[#allocation2 + $0x14] sm:$0xf]
    %v37 = vld [vmem:[#allocation2 + $0x18] sm:$0xf]
    %v38 = vld [vmem:[#allocation2 + $0x1c] sm:$0xf]
    %v39 = vld [vmem:[#allocation2 + $0x20] sm:$0xf]
    %v40 = vld [vmem:[#allocation2 + $0x24] sm:$0xf]
    %v41 = vld [vmem:[#allocation2 + $0x28] sm:$0xf]
    %v42 = vld [vmem:[#allocation2 + $0x2c] sm:$0xf]
    %v43 = vld [vmem:[#allocation2 + $0x30] sm:$0xf]
    %v44 = vld [vmem:[#allocation2 + $0x34] sm:$0xf]
    %v45 = vld [vmem:[#allocation2 + $0x38] sm:$0xf]
    %v46 = vld [vmem:[#allocation2 + $0x3c] sm:$0xf]
    %v47 = vld [vmem:[%s2] sm:$0x1]
    %v48 = vperm.slane %v47, 0
    %v65 = vunpack.c.l.b16 %v31
    %v66 = vunpack.c.l.b16 %v32
    %v67 = vunpack.c.l.b16 %v33
    %v68 = vunpack.c.l.b16 %v34
    %v69 = vunpack.c.l.b16 %v35
    %v70 = vunpack.c.l.b16 %v36
    %v71 = vunpack.c.l.b16 %v37
    %v72 = vunpack.c.l.b16 %v38
    %v73 = vunpack.c.l.b16 %v39
    %v74 = vunpack.c.l.b16 %v40
    %v75 = vunpack.c.l.b16 %v41
    %v76 = vunpack.c.l.b16 %v42
    %v77 = vunpack.c.l.b16 %v43
    %v78 = vunpack.c.l.b16 %v44
    %v79 = vunpack.c.l.b16 %v45
    %v80 = vunpack.c.l.b16 %v46
    %v81 = vpack.c.b16 %v66, %v65
    %v82 = vpack.c.b16 %v68, %v67
    %v83 = vpack.c.b16 %v70, %v69
    %v84 = vpack.c.b16 %v72, %v71
    %v85 = vpack.c.b16 %v74, %v73
    %v86 = vpack.c.b16 %v76, %v75
    %v87 = vpack.c.b16 %v78, %v77
    %v88 = vpack.c.b16 %v80, %v79
    %97 = vmatpush.bf16.msra.mxu0 %v88
    %98 = vmatpush.bf16.msra.mxu0 %v87
    %99 = vmatpush.bf16.msra.mxu0 %v86
    %100 = vmatpush.bf16.msra.mxu0 %v85
    %101 = vmatpush.bf16.msra.mxu0 %v84
    %102 = vmatpush.bf16.msra.mxu0 %v83
    %103 = vmatpush.bf16.msra.mxu0 %v82
    %104 = vmatpush.bf16.msra.mxu0 %v81
    %105 = vmatmul.bf16.gmra.mxu0 %v30
    %v106 = vpop.f32.mrf.mxu0
    %v107 = vadd.f32 %v48, %v106
    %v108 = vpop.f32.mrf.mxu0
    %109 = vdwg.mxu0
    %v110 = vtanh.pop %v107
    %v111 = vpack.c.bf16 %v110, %v110
    %s112 = scalar_lea.vmem [#allocation2], 64
    %v113 = vld [vmem:[%s112] sm:$0xf]
    %v114 = vld [vmem:[%s112 + $0x4] sm:$0xf]
    %v115 = vld [vmem:[%s112 + $0x8] sm:$0xf]
    %v116 = vld [vmem:[%s112 + $0xc] sm:$0xf]
    %v117 = vld [vmem:[%s112 + $0x10] sm:$0xf]
    %v118 = vld [vmem:[%s112 + $0x14] sm:$0xf]
    %v119 = vld [vmem:[%s112 + $0x18] sm:$0xf]
    %v120 = vld [vmem:[%s112 + $0x1c] sm:$0xf]
    %v121 = vld [vmem:[%s112 + $0x20] sm:$0xf]
    %v122 = vld [vmem:[%s112 + $0x24] sm:$0xf]
    %v123 = vld [vmem:[%s112 + $0x28] sm:$0xf]
    %v124 = vld [vmem:[%s112 + $0x2c] sm:$0xf]
    %v125 = vld [vmem:[%s112 + $0x30] sm:$0xf]
    %v126 = vld [vmem:[%s112 + $0x34] sm:$0xf]
    %v127 = vld [vmem:[%s112 + $0x38] sm:$0xf]
    %v128 = vld [vmem:[%s112 + $0x3c] sm:$0xf]
    %v129 = vld [vmem:[%s2 + $0x1] sm:$0x1]
    %v130 = vperm.slane %v129, 0
    %v147 = vunpack.c.l.b16 %v113
    %v148 = vunpack.c.l.b16 %v114
    %v149 = vunpack.c.l.b16 %v115
    %v150 = vunpack.c.l.b16 %v116
    %v151 = vunpack.c.l.b16 %v117
    %v152 = vunpack.c.l.b16 %v118
    %v153 = vunpack.c.l.b16 %v119
    %v154 = vunpack.c.l.b16 %v120
    %v155 = vunpack.c.l.b16 %v121
    %v156 = vunpack.c.l.b16 %v122
    %v157 = vunpack.c.l.b16 %v123
    %v158 = vunpack.c.l.b16 %v124
    %v159 = vunpack.c.l.b16 %v125
    %v160 = vunpack.c.l.b16 %v126
    %v161 = vunpack.c.l.b16 %v127
    %v162 = vunpack.c.l.b16 %v128
    %v163 = vpack.c.b16 %v148, %v147
    %v164 = vpack.c.b16 %v150, %v149
    %v165 = vpack.c.b16 %v152, %v151
    %v166 = vpack.c.b16 %v154, %v153
    %v167 = vpack.c.b16 %v156, %v155
    %v168 = vpack.c.b16 %v158, %v157
    %v169 = vpack.c.b16 %v160, %v159
    %v170 = vpack.c.b16 %v162, %v161
    %179 = vmatpush.bf16.msra.mxu0 %v170
    %180 = vmatpush.bf16.msra.mxu0 %v169
    %181 = vmatpush.bf16.msra.mxu0 %v168
    %182 = vmatpush.bf16.msra.mxu0 %v167
    %183 = vmatpush.bf16.msra.mxu0 %v166
    %184 = vmatpush.bf16.msra.mxu0 %v165
    %185 = vmatpush.bf16.msra.mxu0 %v164
    %186 = vmatpush.bf16.msra.mxu0 %v163
    %187 = vmatmul.bf16.gmra.mxu0 %v111
    %v188 = vpop.f32.mrf.mxu0
    %v189 = vadd.f32 %v130, %v188
    %v190 = vpop.f32.mrf.mxu0
    %191 = vdwg.mxu0
    %v192 = vtanh.pop %v189
    %v193 = vpack.c.bf16 %v192, %v192
    %s194 = scalar_lea.vmem [#allocation2], 128
    %v195 = vld [vmem:[%s194] sm:$0xf]
    %v196 = vld [vmem:[%s194 + $0x4] sm:$0xf]
    %v197 = vld [vmem:[%s194 + $0x8] sm:$0xf]
    %v198 = vld [vmem:[%s194 + $0xc] sm:$0xf]
    %v199 = vld [vmem:[%s194 + $0x10] sm:$0xf]
    %v200 = vld [vmem:[%s194 + $0x14] sm:$0xf]
    %v201 = vld [vmem:[%s194 + $0x18] sm:$0xf]
    %v202 = vld [vmem:[%s194 + $0x1c] sm:$0xf]
    %v203 = vld [vmem:[%s194 + $0x20] sm:$0xf]
    %v204 = vld [vmem:[%s194 + $0x24] sm:$0xf]
    %v205 = vld [vmem:[%s194 + $0x28] sm:$0xf]
    %v206 = vld [vmem:[%s194 + $0x2c] sm:$0xf]
    %v207 = vld [vmem:[%s194 + $0x30] sm:$0xf]
    %v208 = vld [vmem:[%s194 + $0x34] sm:$0xf]
    %v209 = vld [vmem:[%s194 + $0x38] sm:$0xf]
    %v210 = vld [vmem:[%s194 + $0x3c] sm:$0xf]
    %v211 = vld [vmem:[%s2 + $0x2] sm:$0x1]
    %v212 = vperm.slane %v211, 0
    %v229 = vunpack.c.l.b16 %v195
    %v230 = vunpack.c.l.b16 %v196
    %v231 = vunpack.c.l.b16 %v197
    %v232 = vunpack.c.l.b16 %v198
    %v233 = vunpack.c.l.b16 %v199
    %v234 = vunpack.c.l.b16 %v200
    %v235 = vunpack.c.l.b16 %v201
    %v236 = vunpack.c.l.b16 %v202
    %v237 = vunpack.c.l.b16 %v203
    %v238 = vunpack.c.l.b16 %v204
    %v239 = vunpack.c.l.b16 %v205
    %v240 = vunpack.c.l.b16 %v206
    %v241 = vunpack.c.l.b16 %v207
    %v242 = vunpack.c.l.b16 %v208
    %v243 = vunpack.c.l.b16 %v209
    %v244 = vunpack.c.l.b16 %v210
    %v245 = vpack.c.b16 %v230, %v229
    %v246 = vpack.c.b16 %v232, %v231
    %v247 = vpack.c.b16 %v234, %v233
    %v248 = vpack.c.b16 %v236, %v235
    %v249 = vpack.c.b16 %v238, %v237
    %v250 = vpack.c.b16 %v240, %v239
    %v251 = vpack.c.b16 %v242, %v241
    %v252 = vpack.c.b16 %v244, %v243
    %261 = vmatpush.bf16.msra.mxu0 %v252
    %262 = vmatpush.bf16.msra.mxu0 %v251
    %263 = vmatpush.bf16.msra.mxu0 %v250
    %264 = vmatpush.bf16.msra.mxu0 %v249
    %265 = vmatpush.bf16.msra.mxu0 %v248
    %266 = vmatpush.bf16.msra.mxu0 %v247
    %267 = vmatpush.bf16.msra.mxu0 %v246
    %268 = vmatpush.bf16.msra.mxu0 %v245
    %269 = vmatmul.bf16.gmra.mxu0 %v193
    %v270 = vpop.f32.mrf.mxu0
    %v271 = vadd.f32 %v212, %v270
    %v272 = vpop.f32.mrf.mxu0
    %273 = vdwg.mxu0
    %v274 = vtanh.pop %v271
    %v275 = vpack.c.bf16 %v274, %v274
    %s276 = scalar_lea.vmem [#allocation2], 192
    %v277 = vld [vmem:[%s276] sm:$0xf]
    %v278 = vld [vmem:[%s276 + $0x4] sm:$0xf]
    %v279 = vld [vmem:[%s276 + $0x8] sm:$0xf]
    %v280 = vld [vmem:[%s276 + $0xc] sm:$0xf]
    %v281 = vld [vmem:[%s276 + $0x10] sm:$0xf]
    %v282 = vld [vmem:[%s276 + $0x14] sm:$0xf]
    %v283 = vld [vmem:[%s276 + $0x18] sm:$0xf]
    %v284 = vld [vmem:[%s276 + $0x1c] sm:$0xf]
    %v285 = vld [vmem:[%s276 + $0x20] sm:$0xf]
    %v286 = vld [vmem:[%s276 + $0x24] sm:$0xf]
    %v287 = vld [vmem:[%s276 + $0x28] sm:$0xf]
    %v288 = vld [vmem:[%s276 + $0x2c] sm:$0xf]
    %v289 = vld [vmem:[%s276 + $0x30] sm:$0xf]
    %v290 = vld [vmem:[%s276 + $0x34] sm:$0xf]
    %v291 = vld [vmem:[%s276 + $0x38] sm:$0xf]
    %v292 = vld [vmem:[%s276 + $0x3c] sm:$0xf]
    %v293 = vld [vmem:[%s2 + $0x3] sm:$0x1]
    %v294 = vperm.slane %v293, 0
    %v311 = vunpack.c.l.b16 %v277
    %v312 = vunpack.c.l.b16 %v278
    %v313 = vunpack.c.l.b16 %v279
    %v314 = vunpack.c.l.b16 %v280
    %v315 = vunpack.c.l.b16 %v281
    %v316 = vunpack.c.l.b16 %v282
    %v317 = vunpack.c.l.b16 %v283
    %v318 = vunpack.c.l.b16 %v284
    %v319 = vunpack.c.l.b16 %v285
    %v320 = vunpack.c.l.b16 %v286
    %v321 = vunpack.c.l.b16 %v287
    %v322 = vunpack.c.l.b16 %v288
    %v323 = vunpack.c.l.b16 %v289
    %v324 = vunpack.c.l.b16 %v290
    %v325 = vunpack.c.l.b16 %v291
    %v326 = vunpack.c.l.b16 %v292
    %v327 = vpack.c.b16 %v312, %v311
    %v328 = vpack.c.b16 %v314, %v313
    %v329 = vpack.c.b16 %v316, %v315
    %v330 = vpack.c.b16 %v318, %v317
    %v331 = vpack.c.b16 %v320, %v319
    %v332 = vpack.c.b16 %v322, %v321
    %v333 = vpack.c.b16 %v324, %v323
    %v334 = vpack.c.b16 %v326, %v325
    %343 = vmatpush.bf16.msra.mxu0 %v334
    %344 = vmatpush.bf16.msra.mxu0 %v333
    %345 = vmatpush.bf16.msra.mxu0 %v332
    %346 = vmatpush.bf16.msra.mxu0 %v331
    %347 = vmatpush.bf16.msra.mxu0 %v330
    %348 = vmatpush.bf16.msra.mxu0 %v329
    %349 = vmatpush.bf16.msra.mxu0 %v328
    %350 = vmatpush.bf16.msra.mxu0 %v327
    %351 = vmatmul.bf16.gmra.mxu0 %v275
    %v352 = vpop.f32.mrf.mxu0
    %v353 = vadd.f32 %v294, %v352
    %v354 = vpop.f32.mrf.mxu0
    %355 = vdwg.mxu0
    %356 = vst [vmem:[%s3] sm:$0xff] %v353
    // Predicated region
    $region18: #{dqn_forward.1} parent=1 // pred_check
      _
    $region19: #{dqn_forward.1} parent=1 // pred_check_branch
      %358 = sbr.rel (0) target = $region21
    $region20: #{dqn_forward.1} parent=1 // pred_region
      _
    $region21: #{dqn_forward.1} parent=1 // pred_fallthru
      _
    // Predicated region
    $region22: #{dqn_forward.1} parent=1 // pred_check
      _
    $region23: #{dqn_forward.1} parent=1 // pred_check_branch
      %360 = sbr.rel (0) target = $region25
    $region24: #{dqn_forward.1} parent=1 // pred_region
      _
    $region25: #{dqn_forward.1} parent=1 // pred_fallthru
      _
    %361 = vsyncpa [#allocation3], 1

</llo_original>
